<compile_context>
chip_gen: v6e
topology: v6e:2x2x1
jax: 0.10.0
libtpu: 0.0.40
codegen_flags: <defaults>
</compile_context>

<pallas_src>
import functools
import math

import jax
import jax.numpy as jnp
import numpy as np
from jax.experimental import pallas as pl
from jax.experimental.pallas import tpu as pltpu


def _round_up(x, m):
    return (x + m - 1) // m * m


# ----------------------- Pallas kernel: LayerNorm + reduction -----------------------

def patch_merging_kernel(x_ref, g_ref, b_ref, w_ref, o_ref, *, eps):
    # x_ref: (TM, D)   merged-patch tokens (D = kernel_h*kernel_w*C_in)
    # g_ref: (1, D)    LayerNorm gamma
    # b_ref: (1, D)    LayerNorm beta
    # w_ref: (D, Cout) reduction weight, pre-transposed (nn.Linear bias=False)
    # o_ref: (TM, Cout)
    x = x_ref[...].astype(jnp.float32)
    mean = jnp.mean(x, axis=-1, keepdims=True)
    xc = x - mean
    var = jnp.mean(xc * xc, axis=-1, keepdims=True)
    inv = jax.lax.rsqrt(var + eps)                      # EUP rsqrt, off the VALU path
    y = xc * inv * g_ref[0] + b_ref[0]                  # (TM, D)
    out = jnp.dot(y, w_ref[...], preferred_element_type=jnp.float32)
    o_ref[...] = out.astype(o_ref.dtype)


def patch_merging_pallas(tokens, gamma, beta, w_red, *, eps=1e-5, tile_rows=256):
    """tokens: (R, D) lane-dense merged-patch rows. Returns (R, C_out)."""
    R, D = tokens.shape
    C_out = w_red.shape[1]

    # Biggest row tile that makes sense: 256 rows per step (M >= 256 for the MXU);
    # for tiny inputs fall back to a single full-extent block (rounded to 8 sublanes).
    tm = tile_rows if R >= tile_rows else max(8, _round_up(R, 8))
    Rp = _round_up(R, tm)
    if Rp != R:
        tokens = jnp.pad(tokens, ((0, Rp - R), (0, 0)))

    out = pl.pallas_call(
        functools.partial(patch_merging_kernel, eps=eps),
        out_shape=jax.ShapeDtypeStruct((Rp, C_out), tokens.dtype),
        grid_spec=pltpu.PrefetchScalarGridSpec(
            num_scalar_prefetch=0,
            grid=(Rp // tm,),
            in_specs=[
                pl.BlockSpec((tm, D), lambda i: (i, 0)),       # token rows
                pl.BlockSpec((1, D), lambda i: (0, 0)),        # gamma (resident)
                pl.BlockSpec((1, D), lambda i: (0, 0)),        # beta  (resident)
                pl.BlockSpec((D, C_out), lambda i: (0, 0)),    # reduction weight (resident)
            ],
            out_specs=pl.BlockSpec((tm, C_out), lambda i: (i, 0)),
        ),
        compiler_params=pltpu.CompilerParams(
            dimension_semantics=("parallel",)),                # independent rows -> both TCs on v7x
    )(tokens, gamma.reshape(1, D), beta.reshape(1, D), w_red)
    return out[:R]


# ------------------------------ layout glue (JAX) ------------------------------

def adaptive_pad_corner(x_bhwc, kernel, stride, dilation):
    """AdaptivePadding(padding='corner'): zero-pad bottom/right so the unfold covers x."""
    _, H, W, _ = x_bhwc.shape
    kh, kw = kernel
    sh, sw = stride
    dh, dw = dilation
    out_h = math.ceil(H / sh)
    out_w = math.ceil(W / sw)
    pad_h = max((out_h - 1) * sh + (kh - 1) * dh + 1 - H, 0)
    pad_w = max((out_w - 1) * sw + (kw - 1) * dw + 1 - W, 0)
    if pad_h > 0 or pad_w > 0:
        x_bhwc = jnp.pad(x_bhwc, ((0, 0), (0, pad_h), (0, pad_w), (0, 0)))
    return x_bhwc


def unfold_merge(x_bhwc, k):
    """nn.Unfold(kernel=k, stride=k, pad=0, dil=1) followed by transpose(1, 2).

    Feature ordering matches torch: index = c * k*k + ki * k + kj.
    Returns (B, oh*ow, C*k*k), (oh, ow).
    """
    B, H, W, C = x_bhwc.shape
    oh, ow = H // k, W // k
    x = x_bhwc.reshape(B, oh, k, ow, k, C)          # (B, oh, ki, ow, kj, C)
    x = jnp.transpose(x, (0, 1, 3, 5, 2, 4))        # (B, oh, ow, C, ki, kj)
    return x.reshape(B, oh * ow, C * k * k), (oh, ow)


# ------------------------------ full forward pass ------------------------------

def patch_merging_forward(x, input_size, params, *, kernel_size=2, eps=1e-5,
                          use_pallas=True):
    """x: (B, H*W, C_in); input_size: (H, W).

    Returns (B, Merged_H * Merged_W, C_out), (Merged_H, Merged_W).
    Matches PatchMerging(kernel_size=2, stride=2, padding='corner', dilation=1,
    bias=False, norm=LayerNorm).
    """
    B, L, C = x.shape
    H, W = input_size
    assert L == H * W, "input feature has wrong size"
    k = kernel_size

    x = x.reshape(B, H, W, C)
    x = adaptive_pad_corner(x, (k, k), (k, k), (1, 1))
    Hp, Wp = x.shape[1], x.shape[2]

    tokens, (oh, ow) = unfold_merge(x, k)           # (B, oh*ow, k*k*C)
    # output_size formula from the module (padding=0, dilation=1 in the sampler)
    out_h = (Hp - (k - 1) - 1) // k + 1
    out_w = (Wp - (k - 1) - 1) // k + 1
    assert (out_h, out_w) == (oh, ow)

    D = tokens.shape[-1]
    out_ch = params["w_red"].shape[1]
    rows = tokens.reshape(B * oh * ow, D)           # lane-dense flattened rows

    if use_pallas:
        out = patch_merging_pallas(rows, params["gamma"], params["beta"],
                                   params["w_red"], eps=eps)
    else:
        # pure-JAX reference (LayerNorm + bias-free Linear)
        mu = jnp.mean(rows, axis=-1, keepdims=True)
        var = jnp.mean((rows - mu) ** 2, axis=-1, keepdims=True)
        y = (rows - mu) / jnp.sqrt(var + eps) * params["gamma"] + params["beta"]
        out = y @ params["w_red"]

    return out.reshape(B, oh * ow, out_ch), (out_h, out_w)
    # TODO(synk): norm_cfg is fixed to LayerNorm (the module's default); other norm types not implemented.


# ------------------------------------ main ------------------------------------

if __name__ == "__main__":
    # Small config consistent with the module (Swin stage-1-like, scaled down):
    # C_in=32 -> sample_dim = 4*32 = 128 (lane-dense), out_channels = 2*C_in = 64.
    in_channels = 32
    out_channels = 64
    B, H, W = 2, 15, 17          # odd spatial dims exercise AdaptivePadding('corner')
    L = H * W
    D = 4 * in_channels

    key = jax.random.PRNGKey(0)
    k1, k2, k3, k4 = jax.random.split(key, 4)

    params = {
        # LayerNorm(sample_dim) affine params
        "gamma": 1.0 + 0.02 * jax.random.normal(k1, (D,), jnp.float32),
        "beta": 0.02 * jax.random.normal(k2, (D,), jnp.float32),
        # torch nn.Linear(sample_dim, out_channels, bias=False) is y = x @ W.T;
        # store the weight already transposed as (sample_dim, out_channels).
        "w_red": 0.02 * jax.random.normal(k3, (D, out_channels), jnp.float32),
    }

    x = jax.random.normal(k4, (B, L, in_channels), jnp.float32)

    out_pallas, size_pallas = patch_merging_forward(
        x, (H, W), params, use_pallas=True)
    out_pallas = jax.block_until_ready(out_pallas)

    out_ref, size_ref = patch_merging_forward(
        x, (H, W), params, use_pallas=False)
    out_ref = jax.block_until_ready(out_ref)

    expected_size = ((H + 1) // 2, (W + 1) // 2)
    assert size_pallas == size_ref == expected_size
    assert out_pallas.shape == (B, expected_size[0] * expected_size[1], out_channels)
    np.testing.assert_allclose(np.asarray(out_pallas), np.asarray(out_ref),
                               rtol=1e-4, atol=1e-4)
    print("KERNEL_OK")
</pallas_src>

<mosaic_0001>
module attributes {stable_mosaic.version = 11 : i64} {
  func.func @patch_merging_kernel(%arg0: i32, %arg1: memref<144x128xf32, #tpu.memory_space<vmem>>, %arg2: memref<1x128xf32, #tpu.memory_space<vmem>>, %arg3: memref<1x128xf32, #tpu.memory_space<vmem>>, %arg4: memref<128x64xf32, #tpu.memory_space<vmem>>, %arg5: memref<144x64xf32, #tpu.memory_space<vmem>>) attributes {dimension_semantics = [#tpu.dimension_semantics<parallel>], iteration_bounds = array<i64: 1>, scalar_prefetch = 0 : i64, scratch_operands = 0 : i64, tpu.core_type = #tpu.core_type<tc>, window_params = [{transform_indices = @transform_0, window_bounds = array<i64: 144, 128>}, {pipeline_mode = #tpu.pipeline_mode<synchronous>, transform_indices = @transform_1, window_bounds = array<i64: 1, 128>}, {pipeline_mode = #tpu.pipeline_mode<synchronous>, transform_indices = @transform_2, window_bounds = array<i64: 1, 128>}, {pipeline_mode = #tpu.pipeline_mode<synchronous>, transform_indices = @transform_3, window_bounds = array<i64: 128, 64>}, {transform_indices = @transform_4, window_bounds = array<i64: 144, 64>}]} {
    %c0 = arith.constant 0 : index
    %c0_0 = arith.constant 0 : index
    %0 = vector.load %arg1[%c0, %c0_0] : memref<144x128xf32, #tpu.memory_space<vmem>>, vector<144x128xf32>
    %cst = arith.constant dense<0.000000e+00> : vector<144xf32>
    %1 = vector.multi_reduction <add>, %0, %cst [1] : vector<144x128xf32> to vector<144xf32>
    %2 = vector.shape_cast %1 : vector<144xf32> to vector<144x1xf32>
    %cst_1 = arith.constant 1.280000e+02 : f32
    %3 = vector.broadcast %cst_1 : f32 to vector<144x1xf32>
    %4 = arith.divf %2, %3 : vector<144x1xf32>
    %5 = vector.broadcast %4 : vector<144x1xf32> to vector<144x128xf32>
    %6 = arith.subf %0, %5 : vector<144x128xf32>
    %7 = arith.mulf %6, %6 : vector<144x128xf32>
    %cst_2 = arith.constant dense<0.000000e+00> : vector<144xf32>
    %8 = vector.multi_reduction <add>, %7, %cst_2 [1] : vector<144x128xf32> to vector<144xf32>
    %9 = vector.shape_cast %8 : vector<144xf32> to vector<144x1xf32>
    %cst_3 = arith.constant 1.280000e+02 : f32
    %10 = vector.broadcast %cst_3 : f32 to vector<144x1xf32>
    %11 = arith.divf %9, %10 : vector<144x1xf32>
    %cst_4 = arith.constant 9.99999974E-6 : f32
    %12 = vector.broadcast %cst_4 : f32 to vector<144x1xf32>
    %13 = arith.addf %11, %12 : vector<144x1xf32>
    %14 = math.rsqrt %13 : vector<144x1xf32>
    %15 = vector.broadcast %14 : vector<144x1xf32> to vector<144x128xf32>
    %16 = arith.mulf %6, %15 : vector<144x128xf32>
    %c0_5 = arith.constant 0 : index
    %c0_6 = arith.constant 0 : index
    %17 = vector.load %arg2[%c0_5, %c0_6] : memref<1x128xf32, #tpu.memory_space<vmem>>, vector<1x128xf32>
    %18 = vector.shape_cast %17 : vector<1x128xf32> to vector<128xf32>
    %19 = vector.shape_cast %18 : vector<128xf32> to vector<1x128xf32>
    %20 = vector.broadcast %19 : vector<1x128xf32> to vector<144x128xf32>
    %21 = arith.mulf %16, %20 : vector<144x128xf32>
    %c0_7 = arith.constant 0 : index
    %c0_8 = arith.constant 0 : index
    %22 = vector.load %arg3[%c0_7, %c0_8] : memref<1x128xf32, #tpu.memory_space<vmem>>, vector<1x128xf32>
    %23 = vector.shape_cast %22 : vector<1x128xf32> to vector<128xf32>
    %24 = vector.shape_cast %23 : vector<128xf32> to vector<1x128xf32>
    %25 = vector.broadcast %24 : vector<1x128xf32> to vector<144x128xf32>
    %26 = arith.addf %21, %25 : vector<144x128xf32>
    %c0_9 = arith.constant 0 : index
    %c0_10 = arith.constant 0 : index
    %27 = vector.load %arg4[%c0_9, %c0_10] : memref<128x64xf32, #tpu.memory_space<vmem>>, vector<128x64xf32>
    %cst_11 = arith.constant dense<0.000000e+00> : vector<144x64xf32>
    %28 = tpu.matmul %26, %27, %cst_11 {dimension_numbers = #tpu.dot_dimension_numbers<[1], [0], [0], [1], [0, 0, 1, 1], [], []>} : vector<144x128xf32>, vector<128x64xf32>, vector<144x64xf32> -> vector<144x64xf32>
    %c0_12 = arith.constant 0 : index
    %c0_13 = arith.constant 0 : index
    %29 = vector.load %arg5[%c0_12, %c0_13] : memref<144x64xf32, #tpu.memory_space<vmem>>, vector<144x64xf32>
    tpu.vector_store %arg5[%c0_12, %c0_13], %28 {strides = array<i32>} : memref<144x64xf32, #tpu.memory_space<vmem>>, vector<144x64xf32>,
    return
  }
  func.func @transform_0(%arg0: i32) -> (i32, i32) {
    %c0_i32 = arith.constant 0 : i32
    %c0_i32_0 = arith.constant 0 : i32
    return %arg0, %c0_i32 : i32, i32
  }
  func.func @transform_1(%arg0: i32) -> (i32, i32) {
    %c0_i32 = arith.constant 0 : i32
    %c0_i32_0 = arith.constant 0 : i32
    %c0_i32_1 = arith.constant 0 : i32
    return %c0_i32, %c0_i32_0 : i32, i32
  }
  func.func @transform_2(%arg0: i32) -> (i32, i32) {
    %c0_i32 = arith.constant 0 : i32
    %c0_i32_0 = arith.constant 0 : i32
    %c0_i32_1 = arith.constant 0 : i32
    return %c0_i32, %c0_i32_0 : i32, i32
  }
  func.func @transform_3(%arg0: i32) -> (i32, i32) {
    %c0_i32 = arith.constant 0 : i32
    %c0_i32_0 = arith.constant 0 : i32
    %c0_i32_1 = arith.constant 0 : i32
    return %c0_i32, %c0_i32_0 : i32, i32
  }
  func.func @transform_4(%arg0: i32) -> (i32, i32) {
    %c0_i32 = arith.constant 0 : i32
    %c0_i32_0 = arith.constant 0 : i32
    return %arg0, %c0_i32 : i32, i32
  }
}

</mosaic_0001>

<llo_original>
// kernel: tpu_custom_call.1
$region0: #{tpu_custom_call.1}
  #allocation0 [shape = 'u32[]', space=smem, size = 0x4, offset = 0x4, fixed_abs, tag = 'smem constant byte address 0x4 - core index']
  #allocation1 [shape = 'u32[144,128]{1,0:T(1,128)}', space=vmem, size = 0x12000, scoped, tag = 'internal scratch']
  %s0 = inlined_call_operand.vmem [shape: f32[144,128], index: 0, kind: input, shape index: {}]
  %s1 = inlined_call_operand.vmem [shape: f32[1,128], index: 1, kind: input, shape index: {}]
  %s2 = inlined_call_operand.vmem [shape: f32[1,128], index: 2, kind: input, shape index: {}]
  %s3 = inlined_call_operand.vmem [shape: f32[128,64], index: 3, kind: input, shape index: {}]
  %s4 = inlined_call_operand.vmem [shape: f32[144,64], index: 4, kind: output, shape index: {}]
  %s5 = sld [smem:[#allocation0]]
  $region26: #{tpu_custom_call.1} parent=0
    _
  %s7 = ssub.s32 1, %s5
  %s8 = scalar_select 0, %s7, %s5
  // Predicated region
  $region2: #{tpu_custom_call.1} parent=0 // pred_check
    _
  $region3: #{tpu_custom_call.1} parent=0 // pred_check_branch
    %10 = sbr.rel (0) target = $region5
  $region4: #{tpu_custom_call.1} parent=0 // pred_region
    _
  $region5: #{tpu_custom_call.1} parent=0 // pred_fallthru
    _
  // Predicated region
  $region6: #{tpu_custom_call.1} parent=0 // pred_check
    _
  $region7: #{tpu_custom_call.1} parent=0 // pred_check_branch
    %12 = sbr.rel (0) target = $region9
  $region8: #{tpu_custom_call.1} parent=0 // pred_region
    _
  $region9: #{tpu_custom_call.1} parent=0 // pred_fallthru
    _
  // Predicated region
  $region10: #{tpu_custom_call.1} parent=0 // pred_check
    _
  $region11: #{tpu_custom_call.1} parent=0 // pred_check_branch
    %14 = sbr.rel (0) target = $region13
  $region12: #{tpu_custom_call.1} parent=0 // pred_region
    _
  $region13: #{tpu_custom_call.1} parent=0 // pred_fallthru
    _
  // Predicated region
  $region14: #{tpu_custom_call.1} parent=0 // pred_check
    _
  $region15: #{tpu_custom_call.1} parent=0 // pred_check_branch
    %16 = sbr.rel (0) target = $region17
  $region16: #{tpu_custom_call.1} parent=0 // pred_region
    _
  $region17: #{tpu_custom_call.1} parent=0 // pred_fallthru
    _
  %v17 = vld [vmem:[%s0] sm:$0xff]
  %v18 = vld [vmem:[%s0 + $0x8] sm:$0xff]
  %v19 = vld [vmem:[%s0 + $0x10] sm:$0xff]
  %v20 = vld [vmem:[%s0 + $0x18] sm:$0xff]
  %v21 = vld [vmem:[%s0 + $0x20] sm:$0xff]
  %v22 = vld [vmem:[%s0 + $0x28] sm:$0xff]
  %v23 = vld [vmem:[%s0 + $0x30] sm:$0xff]
  %v24 = vld [vmem:[%s0 + $0x38] sm:$0xff]
  %v25 = vld [vmem:[%s0 + $0x40] sm:$0xff]
  %v26 = vld [vmem:[%s0 + $0x48] sm:$0xff]
  %v27 = vld [vmem:[%s0 + $0x50] sm:$0xff]
  %v28 = vld [vmem:[%s0 + $0x58] sm:$0xff]
  %v29 = vld [vmem:[%s0 + $0x60] sm:$0xff]
  %v30 = vld [vmem:[%s0 + $0x68] sm:$0xff]
  %v31 = vld [vmem:[%s0 + $0x70] sm:$0xff]
  %v32 = vld [vmem:[%s0 + $0x78] sm:$0xff]
  %v33 = vld [vmem:[%s0 + $0x80] sm:$0xff]
  %v34 = vld [vmem:[%s0 + $0x88] sm:$0xff]
  %35 = vadd.xlane.f32.xlu0 %v17
  %v36 = vpop.xlane.xlu0 %35
  %37 = vadd.xlane.f32.xlu0 %v18
  %v38 = vpop.xlane.xlu0 %37
  %39 = vadd.xlane.f32.xlu0 %v19
  %v40 = vpop.xlane.xlu0 %39
  %41 = vadd.xlane.f32.xlu0 %v20
  %v42 = vpop.xlane.xlu0 %41
  %43 = vadd.xlane.f32.xlu0 %v21
  %v44 = vpop.xlane.xlu0 %43
  %45 = vadd.xlane.f32.xlu0 %v22
  %v46 = vpop.xlane.xlu0 %45
  %47 = vadd.xlane.f32.xlu0 %v23
  %v48 = vpop.xlane.xlu0 %47
  %49 = vadd.xlane.f32.xlu0 %v24
  %v50 = vpop.xlane.xlu0 %49
  %51 = vadd.xlane.f32.xlu0 %v25
  %v52 = vpop.xlane.xlu0 %51
  %53 = vadd.xlane.f32.xlu0 %v26
  %v54 = vpop.xlane.xlu0 %53
  %55 = vadd.xlane.f32.xlu0 %v27
  %v56 = vpop.xlane.xlu0 %55
  %57 = vadd.xlane.f32.xlu0 %v28
  %v58 = vpop.xlane.xlu0 %57
  %59 = vadd.xlane.f32.xlu0 %v29
  %v60 = vpop.xlane.xlu0 %59
  %61 = vadd.xlane.f32.xlu0 %v30
  %v62 = vpop.xlane.xlu0 %61
  %63 = vadd.xlane.f32.xlu0 %v31
  %v64 = vpop.xlane.xlu0 %63
  %65 = vadd.xlane.f32.xlu0 %v32
  %v66 = vpop.xlane.xlu0 %65
  %67 = vadd.xlane.f32.xlu0 %v33
  %v68 = vpop.xlane.xlu0 %67
  %69 = vadd.xlane.f32.xlu0 %v34
  %v70 = vpop.xlane.xlu0 %69
  %v71 = vrcp.pop 128.0
  %v72 = vmul.f32 %v36, %v71
  %v73 = vmul.f32 %v38, %v71
  %v74 = vmul.f32 %v40, %v71
  %v75 = vmul.f32 %v42, %v71
  %v76 = vmul.f32 %v44, %v71
  %v77 = vmul.f32 %v46, %v71
  %v78 = vmul.f32 %v48, %v71
  %v79 = vmul.f32 %v50, %v71
  %v80 = vmul.f32 %v52, %v71
  %v81 = vmul.f32 %v54, %v71
  %v82 = vmul.f32 %v56, %v71
  %v83 = vmul.f32 %v58, %v71
  %v84 = vmul.f32 %v60, %v71
  %v85 = vmul.f32 %v62, %v71
  %v86 = vmul.f32 %v64, %v71
  %v87 = vmul.f32 %v66, %v71
  %v88 = vmul.f32 %v68, %v71
  %v89 = vmul.f32 %v70, %v71
  %v90 = vsub.f32 %v17, %v72
  %v91 = vsub.f32 %v18, %v73
  %v92 = vsub.f32 %v19, %v74
  %v93 = vsub.f32 %v20, %v75
  %v94 = vsub.f32 %v21, %v76
  %v95 = vsub.f32 %v22, %v77
  %v96 = vsub.f32 %v23, %v78
  %v97 = vsub.f32 %v24, %v79
  %v98 = vsub.f32 %v25, %v80
  %v99 = vsub.f32 %v26, %v81
  %v100 = vsub.f32 %v27, %v82
  %v101 = vsub.f32 %v28, %v83
  %v102 = vsub.f32 %v29, %v84
  %v103 = vsub.f32 %v30, %v85
  %v104 = vsub.f32 %v31, %v86
  %v105 = vsub.f32 %v32, %v87
  %v106 = vsub.f32 %v33, %v88
  %v107 = vsub.f32 %v34, %v89
  %v108 = vmul.f32 %v90, %v90
  %v109 = vmul.f32 %v91, %v91
  %v110 = vmul.f32 %v92, %v92
  %v111 = vmul.f32 %v93, %v93
  %v112 = vmul.f32 %v94, %v94
  %v113 = vmul.f32 %v95, %v95
  %v114 = vmul.f32 %v96, %v96
  %v115 = vmul.f32 %v97, %v97
  %v116 = vmul.f32 %v98, %v98
  %v117 = vmul.f32 %v99, %v99
  %v118 = vmul.f32 %v100, %v100
  %v119 = vmul.f32 %v101, %v101
  %v120 = vmul.f32 %v102, %v102
  %v121 = vmul.f32 %v103, %v103
  %v122 = vmul.f32 %v104, %v104
  %v123 = vmul.f32 %v105, %v105
  %v124 = vmul.f32 %v106, %v106
  %v125 = vmul.f32 %v107, %v107
  %126 = vadd.xlane.f32.xlu0 %v108
  %v127 = vpop.xlane.xlu0 %126
  %128 = vadd.xlane.f32.xlu0 %v109
  %v129 = vpop.xlane.xlu0 %128
  %130 = vadd.xlane.f32.xlu0 %v110
  %v131 = vpop.xlane.xlu0 %130
  %132 = vadd.xlane.f32.xlu0 %v111
  %v133 = vpop.xlane.xlu0 %132
  %134 = vadd.xlane.f32.xlu0 %v112
  %v135 = vpop.xlane.xlu0 %134
  %136 = vadd.xlane.f32.xlu0 %v113
  %v137 = vpop.xlane.xlu0 %136
  %138 = vadd.xlane.f32.xlu0 %v114
  %v139 = vpop.xlane.xlu0 %138
  %140 = vadd.xlane.f32.xlu0 %v115
  %v141 = vpop.xlane.xlu0 %140
  %142 = vadd.xlane.f32.xlu0 %v116
  %v143 = vpop.xlane.xlu0 %142
  %144 = vadd.xlane.f32.xlu0 %v117
  %v145 = vpop.xlane.xlu0 %144
  %146 = vadd.xlane.f32.xlu0 %v118
  %v147 = vpop.xlane.xlu0 %146
  %148 = vadd.xlane.f32.xlu0 %v119
  %v149 = vpop.xlane.xlu0 %148
  %150 = vadd.xlane.f32.xlu0 %v120
  %v151 = vpop.xlane.xlu0 %150
  %152 = vadd.xlane.f32.xlu0 %v121
  %v153 = vpop.xlane.xlu0 %152
  %154 = vadd.xlane.f32.xlu0 %v122
  %v155 = vpop.xlane.xlu0 %154
  %156 = vadd.xlane.f32.xlu0 %v123
  %v157 = vpop.xlane.xlu0 %156
  %158 = vadd.xlane.f32.xlu0 %v124
  %v159 = vpop.xlane.xlu0 %158
  %160 = vadd.xlane.f32.xlu0 %v125
  %v161 = vpop.xlane.xlu0 %160
  %v162 = vmul.f32 %v127, %v71
  %v163 = vmul.f32 %v129, %v71
  %v164 = vmul.f32 %v131, %v71
  %v165 = vmul.f32 %v133, %v71
  %v166 = vmul.f32 %v135, %v71
  %v167 = vmul.f32 %v137, %v71
  %v168 = vmul.f32 %v139, %v71
  %v169 = vmul.f32 %v141, %v71
  %v170 = vmul.f32 %v143, %v71
  %v171 = vmul.f32 %v145, %v71
  %v172 = vmul.f32 %v147, %v71
  %v173 = vmul.f32 %v149, %v71
  %v174 = vmul.f32 %v151, %v71
  %v175 = vmul.f32 %v153, %v71
  %v176 = vmul.f32 %v155, %v71
  %v177 = vmul.f32 %v157, %v71
  %v178 = vmul.f32 %v159, %v71
  %v179 = vmul.f32 %v161, %v71
  %v180 = vadd.f32 %v162, 1e-05
  %v181 = vadd.f32 %v163, 1e-05
  %v182 = vadd.f32 %v164, 1e-05
  %v183 = vadd.f32 %v165, 1e-05
  %v184 = vadd.f32 %v166, 1e-05
  %v185 = vadd.f32 %v167, 1e-05
  %v186 = vadd.f32 %v168, 1e-05
  %v187 = vadd.f32 %v169, 1e-05
  %v188 = vadd.f32 %v170, 1e-05
  %v189 = vadd.f32 %v171, 1e-05
  %v190 = vadd.f32 %v172, 1e-05
  %v191 = vadd.f32 %v173, 1e-05
  %v192 = vadd.f32 %v174, 1e-05
  %v193 = vadd.f32 %v175, 1e-05
  %v194 = vadd.f32 %v176, 1e-05
  %v195 = vadd.f32 %v177, 1e-05
  %v196 = vadd.f32 %v178, 1e-05
  %v197 = vadd.f32 %v179, 1e-05
  %v198 = vrsqrt.pop %v180
  %v199 = vrsqrt.pop %v181
  %v200 = vrsqrt.pop %v182
  %v201 = vrsqrt.pop %v183
  %v202 = vrsqrt.pop %v184
  %v203 = vrsqrt.pop %v185
  %v204 = vrsqrt.pop %v186
  %v205 = vrsqrt.pop %v187
  %v206 = vrsqrt.pop %v188
  %v207 = vrsqrt.pop %v189
  %v208 = vrsqrt.pop %v190
  %v209 = vrsqrt.pop %v191
  %v210 = vrsqrt.pop %v192
  %v211 = vrsqrt.pop %v193
  %v212 = vrsqrt.pop %v194
  %v213 = vrsqrt.pop %v195
  %v214 = vrsqrt.pop %v196
  %v215 = vrsqrt.pop %v197
  %v216 = vmul.f32 %v90, %v198
  %v217 = vmul.f32 %v91, %v199
  %v218 = vmul.f32 %v92, %v200
  %v219 = vmul.f32 %v93, %v201
  %v220 = vmul.f32 %v94, %v202
  %v221 = vmul.f32 %v95, %v203
  %v222 = vmul.f32 %v96, %v204
  %v223 = vmul.f32 %v97, %v205
  %v224 = vmul.f32 %v98, %v206
  %v225 = vmul.f32 %v99, %v207
  %v226 = vmul.f32 %v100, %v208
  %v227 = vmul.f32 %v101, %v209
  %v228 = vmul.f32 %v102, %v210
  %v229 = vmul.f32 %v103, %v211
  %v230 = vmul.f32 %v104, %v212
  %v231 = vmul.f32 %v105, %v213
  %v232 = vmul.f32 %v106, %v214
  %v233 = vmul.f32 %v107, %v215
  %v234 = vld [vmem:[%s1] sm:$0x1]
  %v236 = vlaneseq
  %v237 = vshrl.u32 %v236, 7
  %v238 = vsub.s32 0, %v237
  %v239 = vrot.slane %v234, %v238
  %v241 = vmul.f32 %v216, %v239
  %v242 = vmul.f32 %v217, %v239
  %v243 = vmul.f32 %v218, %v239
  %v244 = vmul.f32 %v219, %v239
  %v245 = vmul.f32 %v220, %v239
  %v246 = vmul.f32 %v221, %v239
  %v247 = vmul.f32 %v222, %v239
  %v248 = vmul.f32 %v223, %v239
  %v249 = vmul.f32 %v224, %v239
  %v250 = vmul.f32 %v225, %v239
  %v251 = vmul.f32 %v226, %v239
  %v252 = vmul.f32 %v227, %v239
  %v253 = vmul.f32 %v228, %v239
  %v254 = vmul.f32 %v229, %v239
  %v255 = vmul.f32 %v230, %v239
  %v256 = vmul.f32 %v231, %v239
  %v257 = vmul.f32 %v232, %v239
  %v258 = vmul.f32 %v233, %v239
  %v259 = vld [vmem:[%s2] sm:$0x1]
  %v261 = vlaneseq
  %v262 = vshrl.u32 %v261, 7
  %v263 = vsub.s32 0, %v262
  %v264 = vrot.slane %v259, %v263
  %v266 = vadd.f32 %v241, %v264
  %v267 = vadd.f32 %v242, %v264
  %v268 = vadd.f32 %v243, %v264
  %v269 = vadd.f32 %v244, %v264
  %v270 = vadd.f32 %v245, %v264
  %v271 = vadd.f32 %v246, %v264
  %v272 = vadd.f32 %v247, %v264
  %v273 = vadd.f32 %v248, %v264
  %v274 = vadd.f32 %v249, %v264
  %v275 = vadd.f32 %v250, %v264
  %v276 = vadd.f32 %v251, %v264
  %v277 = vadd.f32 %v252, %v264
  %v278 = vadd.f32 %v253, %v264
  %v279 = vadd.f32 %v254, %v264
  %v280 = vadd.f32 %v255, %v264
  %v281 = vadd.f32 %v256, %v264
  %v282 = vadd.f32 %v257, %v264
  %v283 = vadd.f32 %v258, %v264
  %v284 = vld [vmem:[%s3] sm:$0xff]
  %v285 = vld [vmem:[%s3 + $0x8] sm:$0xff]
  %v286 = vld [vmem:[%s3 + $0x10] sm:$0xff]
  %v287 = vld [vmem:[%s3 + $0x18] sm:$0xff]
  %v288 = vld [vmem:[%s3 + $0x20] sm:$0xff]
  %v289 = vld [vmem:[%s3 + $0x28] sm:$0xff]
  %v290 = vld [vmem:[%s3 + $0x30] sm:$0xff]
  %v291 = vld [vmem:[%s3 + $0x38] sm:$0xff]
  %v292 = vld [vmem:[%s3 + $0x40] sm:$0xff]
  %v293 = vld [vmem:[%s3 + $0x48] sm:$0xff]
  %v294 = vld [vmem:[%s3 + $0x50] sm:$0xff]
  %v295 = vld [vmem:[%s3 + $0x58] sm:$0xff]
  %v296 = vld [vmem:[%s3 + $0x60] sm:$0xff]
  %v297 = vld [vmem:[%s3 + $0x68] sm:$0xff]
  %v298 = vld [vmem:[%s3 + $0x70] sm:$0xff]
  %v299 = vld [vmem:[%s3 + $0x78] sm:$0xff]
  %300 = vmatprep.subr.mxu0 0.0
  %301 = vmatpush1.msra.mxu0 %v299
  %302 = vmatprep.subr.mxu0 0.0
  %303 = vmatpush1.msra.mxu0 %v298
  %304 = vmatprep.subr.mxu0 0.0
  %305 = vmatpush1.msra.mxu0 %v297
  %306 = vmatprep.subr.mxu0 0.0
  %307 = vmatpush1.msra.mxu0 %v296
  %308 = vmatprep.subr.mxu0 0.0
  %309 = vmatpush1.msra.mxu0 %v295
  %310 = vmatprep.subr.mxu0 0.0
  %311 = vmatpush1.msra.mxu0 %v294
  %312 = vmatprep.subr.mxu0 0.0
  %313 = vmatpush1.msra.mxu0 %v293
  %314 = vmatprep.subr.mxu0 0.0
  %315 = vmatpush1.msra.mxu0 %v292
  %316 = vmatprep.subr.mxu0 0.0
  %317 = vmatpush1.msra.mxu0 %v291
  %318 = vmatprep.subr.mxu0 0.0
  %319 = vmatpush1.msra.mxu0 %v290
  %320 = vmatprep.subr.mxu0 0.0
  %321 = vmatpush1.msra.mxu0 %v289
  %322 = vmatprep.subr.mxu0 0.0
  %323 = vmatpush1.msra.mxu0 %v288
  %324 = vmatprep.subr.mxu0 0.0
  %325 = vmatpush1.msra.mxu0 %v287
  %326 = vmatprep.subr.mxu0 0.0
  %327 = vmatpush1.msra.mxu0 %v286
  %328 = vmatprep.subr.mxu0 0.0
  %329 = vmatpush1.msra.mxu0 %v285
  %330 = vmatprep.subr.mxu0 0.0
  %331 = vmatpush1.msra.mxu0 %v284
  %332 = vmatprep.subr.mxu0 0.0
  %333 = vmatpush2.msra.mxu0 0.0
  %334 = vmatprep.subr.mxu0 0.0
  %335 = vmatpush2.msra.mxu0 0.0
  %336 = vmatprep.subr.mxu0 0.0
  %337 = vmatpush2.msra.mxu0 0.0
  %338 = vmatprep.subr.mxu0 0.0
  %339 = vmatpush2.msra.mxu0 0.0
  %340 = vmatprep.subr.mxu0 0.0
  %341 = vmatpush2.msra.mxu0 0.0
  %342 = vmatprep.subr.mxu0 0.0
  %343 = vmatpush2.msra.mxu0 0.0
  %344 = vmatprep.subr.mxu0 0.0
  %345 = vmatpush2.msra.mxu0 0.0
  %346 = vmatprep.subr.mxu0 0.0
  %347 = vmatpush2.msra.mxu0 0.0
  %348 = vmatprep.subr.mxu0 0.0
  %349 = vmatpush2.msra.mxu0 0.0
  %350 = vmatprep.subr.mxu0 0.0
  %351 = vmatpush2.msra.mxu0 0.0
  %352 = vmatprep.subr.mxu0 0.0
  %353 = vmatpush2.msra.mxu0 0.0
  %354 = vmatprep.subr.mxu0 0.0
  %355 = vmatpush2.msra.mxu0 0.0
  %356 = vmatprep.subr.mxu0 0.0
  %357 = vmatpush2.msra.mxu0 0.0
  %358 = vmatprep.subr.mxu0 0.0
  %359 = vmatpush2.msra.mxu0 0.0
  %360 = vmatprep.subr.mxu0 0.0
  %361 = vmatpush2.msra.mxu0 0.0
  %362 = vmatprep.subr.mxu0 0.0
  %363 = vmatpush2.msra.mxu0 0.0
  %364 = vmatprep.mubr.f32.mxu0 0.0
  %365 = vmatmul.mubr.f32.gmra.mxu0 %v266
  %v366 = vpop.f32.mrf.mxu0
  %v367 = vadd.f32 0.0, %v366
  %v368 = vpop.f32.mrf.mxu0
  %369 = vmatprep.mubr.f32.mxu0 0.0
  %370 = vmatmul.mubr.f32.gmra.mxu0 %v267
  %v371 = vpop.f32.mrf.mxu0
  %v372 = vadd.f32 0.0, %v371
  %v373 = vpop.f32.mrf.mxu0
  %374 = vmatprep.mubr.f32.mxu0 0.0
  %375 = vmatmul.mubr.f32.gmra.mxu0 %v268
  %v376 = vpop.f32.mrf.mxu0
  %v377 = vadd.f32 0.0, %v376
  %v378 = vpop.f32.mrf.mxu0
  %379 = vmatprep.mubr.f32.mxu0 0.0
  %380 = vmatmul.mubr.f32.gmra.mxu0 %v269
  %v381 = vpop.f32.mrf.mxu0
  %v382 = vadd.f32 0.0, %v381
  %v383 = vpop.f32.mrf.mxu0
  %384 = vmatprep.mubr.f32.mxu0 0.0
  %385 = vmatmul.mubr.f32.gmra.mxu0 %v270
  %v386 = vpop.f32.mrf.mxu0
  %v387 = vadd.f32 0.0, %v386
  %v388 = vpop.f32.mrf.mxu0
  %389 = vmatprep.mubr.f32.mxu0 0.0
  %390 = vmatmul.mubr.f32.gmra.mxu0 %v271
  %v391 = vpop.f32.mrf.mxu0
  %v392 = vadd.f32 0.0, %v391
  %v393 = vpop.f32.mrf.mxu0
  %394 = vmatprep.mubr.f32.mxu0 0.0
  %395 = vmatmul.mubr.f32.gmra.mxu0 %v272
  %v396 = vpop.f32.mrf.mxu0
  %v397 = vadd.f32 0.0, %v396
  %v398 = vpop.f32.mrf.mxu0
  %399 = vmatprep.mubr.f32.mxu0 0.0
  %400 = vmatmul.mubr.f32.gmra.mxu0 %v273
  %v401 = vpop.f32.mrf.mxu0
  %v402 = vadd.f32 0.0, %v401
  %v403 = vpop.f32.mrf.mxu0
  %404 = vmatprep.mubr.f32.mxu0 0.0
  %405 = vmatmul.mubr.f32.gmra.mxu0 %v274
  %v406 = vpop.f32.mrf.mxu0
  %v407 = vadd.f32 0.0, %v406
  %v408 = vpop.f32.mrf.mxu0
  %409 = vmatprep.mubr.f32.mxu0 0.0
  %410 = vmatmul.mubr.f32.gmra.mxu0 %v275
  %v411 = vpop.f32.mrf.mxu0
  %v412 = vadd.f32 0.0, %v411
  %v413 = vpop.f32.mrf.mxu0
  %414 = vmatprep.mubr.f32.mxu0 0.0
  %415 = vmatmul.mubr.f32.gmra.mxu0 %v276
  %v416 = vpop.f32.mrf.mxu0
  %v417 = vadd.f32 0.0, %v416
  %v418 = vpop.f32.mrf.mxu0
  %419 = vmatprep.mubr.f32.mxu0 0.0
  %420 = vmatmul.mubr.f32.gmra.mxu0 %v277
  %v421 = vpop.f32.mrf.mxu0
  %v422 = vadd.f32 0.0, %v421
  %v423 = vpop.f32.mrf.mxu0
  %424 = vmatprep.mubr.f32.mxu0 0.0
  %425 = vmatmul.mubr.f32.gmra.mxu0 %v278
  %v426 = vpop.f32.mrf.mxu0
  %v427 = vadd.f32 0.0, %v426
  %v428 = vpop.f32.mrf.mxu0
  %429 = vmatprep.mubr.f32.mxu0 0.0
  %430 = vmatmul.mubr.f32.gmra.mxu0 %v279
  %v431 = vpop.f32.mrf.mxu0
  %v432 = vadd.f32 0.0, %v431
  %v433 = vpop.f32.mrf.mxu0
  %434 = vmatprep.mubr.f32.mxu0 0.0
  %435 = vmatmul.mubr.f32.gmra.mxu0 %v280
  %v436 = vpop.f32.mrf.mxu0
  %v437 = vadd.f32 0.0, %v436
  %v438 = vpop.f32.mrf.mxu0
  %439 = vmatprep.mubr.f32.mxu0 0.0
  %440 = vmatmul.mubr.f32.gmra.mxu0 %v281
  %v441 = vpop.f32.mrf.mxu0
  %v442 = vadd.f32 0.0, %v441
  %v443 = vpop.f32.mrf.mxu0
  %444 = vmatprep.mubr.f32.mxu0 0.0
  %445 = vmatmul.mubr.f32.gmra.mxu0 %v282
  %v446 = vpop.f32.mrf.mxu0
  %v447 = vadd.f32 0.0, %v446
  %v448 = vpop.f32.mrf.mxu0
  %449 = vmatprep.mubr.f32.mxu0 0.0
  %450 = vmatmul.mubr.f32.gmra.mxu0 %v283
  %v451 = vpop.f32.mrf.mxu0
  %v452 = vadd.f32 0.0, %v451
  %v453 = vpop.f32.mrf.mxu0
  %454 = vdwg.mxu0
  %vm455 = vcmask 523264
  %456 = vst.msk [vmem:[%s4] sm:$0xff] %vm455, %v367
  %457 = vst.msk [vmem:[%s4 + $0x8] sm:$0xff] %vm455, %v372
  %458 = vst.msk [vmem:[%s4 + $0x10] sm:$0xff] %vm455, %v377
  %459 = vst.msk [vmem:[%s4 + $0x18] sm:$0xff] %vm455, %v382
  %460 = vst.msk [vmem:[%s4 + $0x20] sm:$0xff] %vm455, %v387
  %461 = vst.msk [vmem:[%s4 + $0x28] sm:$0xff] %vm455, %v392
  %462 = vst.msk [vmem:[%s4 + $0x30] sm:$0xff] %vm455, %v397
  %463 = vst.msk [vmem:[%s4 + $0x38] sm:$0xff] %vm455, %v402
  %464 = vst.msk [vmem:[%s4 + $0x40] sm:$0xff] %vm455, %v407
  %465 = vst.msk [vmem:[%s4 + $0x48] sm:$0xff] %vm455, %v412
  %466 = vst.msk [vmem:[%s4 + $0x50] sm:$0xff] %vm455, %v417
  %467 = vst.msk [vmem:[%s4 + $0x58] sm:$0xff] %vm455, %v422
  %468 = vst.msk [vmem:[%s4 + $0x60] sm:$0xff] %vm455, %v427
  %469 = vst.msk [vmem:[%s4 + $0x68] sm:$0xff] %vm455, %v432
  %470 = vst.msk [vmem:[%s4 + $0x70] sm:$0xff] %vm455, %v437
  %471 = vst.msk [vmem:[%s4 + $0x78] sm:$0xff] %vm455, %v442
  %472 = vst.msk [vmem:[%s4 + $0x80] sm:$0xff] %vm455, %v447
  %473 = vst.msk [vmem:[%s4 + $0x88] sm:$0xff] %vm455, %v452
  // Predicated region
  $region18: #{tpu_custom_call.1} parent=0 // pred_check
    _
  $region19: #{tpu_custom_call.1} parent=0 // pred_check_branch
    %475 = sbr.rel (0) target = $region21
  $region20: #{tpu_custom_call.1} parent=0 // pred_region
    _
  $region21: #{tpu_custom_call.1} parent=0 // pred_fallthru
    _
  // Predicated region
  $region22: #{tpu_custom_call.1} parent=0 // pred_check
    _
  $region23: #{tpu_custom_call.1} parent=0 // pred_check_branch
    %477 = sbr.rel (0) target = $region25
  $region24: #{tpu_custom_call.1} parent=0 // pred_region
    _
  $region25: #{tpu_custom_call.1} parent=0 // pred_fallthru
    _

</llo_original>
